<compile_context>
chip_gen: v7x
topology: tpu7x:2x2x1
jax: 0.10.0
libtpu: 0.0.40
codegen_flags: <defaults>
</compile_context>

<pallas_src>
import functools

import jax
import jax.numpy as jnp
from jax.experimental import pallas as pl
from jax.experimental.pallas import tpu as pltpu

_LANE = 128
_SUB = 8
_VREG = _SUB * _LANE     # 1024 elements: minimal pad granularity
_TM_MAX = 4096           # rows/block: 4096*128*4B = 2 MiB -> 2 inputs x 2 bufs = 8 MiB
_NUM_SPLITS = 2          # leading "parallel" grid axis (dual-TC on v7x)


def _norm_pct_kernel(steps_per_split, n_blocks, tm, last_rows, needs_clamp,
                     o_ref, t_ref, out_ref):
    """Accumulate partial sums of |t-o|/t, o and o^2 into a (1,3,8,128) block.

    The output block index depends only on the parallel axis, so it stays
    resident in VMEM across the (arbitrary) reduction axis.
    """
    c = pl.program_id(0)          # parallel split (core) index
    s = pl.program_id(1)          # sequential step within the split
    gblk = c * steps_per_split + s

    @pl.when(s == 0)
    def _init():
        out_ref[...] = jnp.zeros_like(out_ref)

    def accum(valid_rows):
        o = o_ref[...].astype(jnp.float32)
        t = t_ref[...].astype(jnp.float32) + jnp.float32(1e-20)
        # abs-diff times reciprocal (EUP) instead of a VALU divide chain.
        ratio = jnp.abs(t - o) * pl.reciprocal(t, approx=False)
        if valid_rows is not None:
            # Select-based masking of the undefined tail of the ragged block
            # (never multiply-by-mask: garbage/NaN must not leak in).
            rows_ok = (jax.lax.broadcasted_iota(jnp.int32, (tm, _LANE), 0)
                       < valid_rows)
            ratio = jnp.where(rows_ok, ratio, jnp.float32(0.0))
            o = jnp.where(rows_ok, o, jnp.float32(0.0))
        # (tm,128) -> (tm//8, 8, 128) is a free regrouping of vreg tiles;
        # summing axis 0 is pure VPU vreg adds into (8,128) partials.
        r3 = ratio.reshape(tm // _SUB, _SUB, _LANE)
        o3 = o.reshape(tm // _SUB, _SUB, _LANE)
        out_ref[0, 0, :, :] += jnp.sum(r3, axis=0)
        out_ref[0, 1, :, :] += jnp.sum(o3, axis=0)
        out_ref[0, 2, :, :] += jnp.sum(o3 * o3, axis=0)

    if last_rows < tm:
        # Ragged last block: mask only there; every other step is mask-free.
        @pl.when(gblk < n_blocks - 1)
        def _full():
            accum(None)

        @pl.when(gblk == n_blocks - 1)
        def _ragged():
            accum(last_rows)
    elif needs_clamp:
        # Odd block count split across 2 cores: skip the redundant last step.
        @pl.when(gblk < n_blocks)
        def _guarded():
            accum(None)
    else:
        accum(None)


def norm_pct_loss(output, target, norm_weight, *, tm_max=_TM_MAX):
    """Pallas implementation of NormPCTLoss.forward."""
    assert output.shape == target.shape
    n = int(output.size)

    o_flat = jnp.ravel(output)
    t_flat = jnp.ravel(target)

    # Pad only to one-vreg (8x128) granularity.  Pad values are chosen so each
    # padded element contributes exactly ratio=1, o=0, o^2=0; the ratio sum is
    # corrected by the (static) pad count below.  Aligned sizes take the
    # zero-copy path.
    pad = (-n) % _VREG
    if pad:
        o_flat = jnp.pad(o_flat, (0, pad))                       # output -> 0
        t_flat = jnp.pad(t_flat, (0, pad), constant_values=1)    # target -> 1
    rows = (n + pad) // _LANE                                    # multiple of 8

    tm_max = max(_SUB, (int(tm_max) // _SUB) * _SUB)
    tm = min(rows, tm_max)
    n_blocks = -(-rows // tm)
    last_rows = rows - (n_blocks - 1) * tm                       # in [8, tm]
    n_splits = _NUM_SPLITS if n_blocks >= _NUM_SPLITS else 1
    steps = -(-n_blocks // n_splits)
    needs_clamp = n_splits * steps > n_blocks

    o2d = o_flat.reshape(rows, _LANE)
    t2d = t_flat.reshape(rows, _LANE)

    def in_map(c, s):
        blk = c * steps + s
        if needs_clamp:
            blk = jnp.minimum(blk, n_blocks - 1)   # redundant step re-reads last block
        return (blk, 0)

    kernel = functools.partial(_norm_pct_kernel, steps, n_blocks, tm,
                               last_rows, needs_clamp)

    partials = pl.pallas_call(
        kernel,
        out_shape=jax.ShapeDtypeStruct((n_splits, 3, _SUB, _LANE), jnp.float32),
        grid_spec=pltpu.PrefetchScalarGridSpec(
            num_scalar_prefetch=0,
            grid=(n_splits, steps),
            in_specs=[
                pl.BlockSpec((tm, _LANE), in_map),   # output
                pl.BlockSpec((tm, _LANE), in_map),   # target
            ],
            out_specs=pl.BlockSpec((1, 3, _SUB, _LANE),
                                   lambda c, s: (c, 0, 0, 0)),
        ),
        compiler_params=pltpu.CompilerParams(
            dimension_semantics=("parallel", "arbitrary"),
            vmem_limit_bytes=32 * 1024 * 1024),
    )(o2d, t2d)

    # Final combine in the wrapper (tiny: n_splits*3*8*128 floats).
    sums = jnp.sum(partials, axis=(0, 2, 3))        # (3,): ratio, o, o^2
    s_ratio = sums[0] - jnp.float32(pad)            # remove pad contributions
    s_o = sums[1]
    s_oo = sums[2]
    nf = jnp.float32(n)
    mean_ratio = s_ratio / nf
    # Unbiased variance over all elements of `output` (torch.var default).
    var = (s_oo - s_o * s_o / nf) / (nf - jnp.float32(1.0))
    return mean_ratio - jnp.log(var) * jnp.float32(norm_weight)


def _reference(output, target, norm_weight):
    o = output.astype(jnp.float32)
    t = target.astype(jnp.float32) + jnp.float32(1e-20)
    mean_ratio = jnp.mean(jnp.abs(t - o) / t)
    var = jnp.var(o, ddof=1)  # torch.var default is unbiased
    return mean_ratio - jnp.log(var) * jnp.float32(norm_weight)


if __name__ == "__main__":
    key = jax.random.PRNGKey(0)
    k1, k2, k3, k4, k5, k6 = jax.random.split(key, 6)
    norm_weight = 0.1

    # 1) Aligned NCHW input (zero-copy, single block, single split).
    out1 = jax.random.uniform(k1, (2, 4, 16, 16), jnp.float32, 0.1, 1.0)
    tgt1 = jax.random.uniform(k2, (2, 4, 16, 16), jnp.float32, 0.5, 1.5)
    loss1 = jax.block_until_ready(norm_pct_loss(out1, tgt1, norm_weight))
    ref1 = _reference(out1, tgt1, norm_weight)
    assert jnp.allclose(loss1, ref1, rtol=1e-5, atol=1e-5), (loss1, ref1)

    # 2) Unaligned size -> pad-value-trick path.
    out2 = jax.random.uniform(k3, (3, 5, 17, 13), jnp.float32, 0.1, 1.0)
    tgt2 = jax.random.uniform(k4, (3, 5, 17, 13), jnp.float32, 0.5, 1.5)
    loss2 = jax.block_until_ready(norm_pct_loss(out2, tgt2, norm_weight))
    ref2 = _reference(out2, tgt2, norm_weight)
    assert jnp.allclose(loss2, ref2, rtol=1e-5, atol=1e-5), (loss2, ref2)

    # 3) Force multi-block / dual-split paths with a tiny tile so the test
    #    stays small: (a) ragged last block, (b) clamped redundant step.
    out3 = jax.random.uniform(k5, (2, 3, 20, 20), jnp.float32, 0.1, 1.0)
    tgt3 = jax.random.uniform(k6, (2, 3, 20, 20), jnp.float32, 0.5, 1.5)
    ref3 = _reference(out3, tgt3, norm_weight)
    loss3a = jax.block_until_ready(
        norm_pct_loss(out3, tgt3, norm_weight, tm_max=16))  # ragged last block
    loss3b = jax.block_until_ready(
        norm_pct_loss(out3, tgt3, norm_weight, tm_max=8))   # clamped extra step
    assert jnp.allclose(loss3a, ref3, rtol=1e-5, atol=1e-5), (loss3a, ref3)
    assert jnp.allclose(loss3b, ref3, rtol=1e-5, atol=1e-5), (loss3b, ref3)

    print("KERNEL_OK")
</pallas_src>

<mosaic_0001>
module attributes {stable_mosaic.version = 11 : i64} {
  func.func @_norm_pct_kernel(%arg0: i32, %arg1: i32, %arg2: memref<16x128xf32, #tpu.memory_space<vmem>>, %arg3: memref<16x128xf32, #tpu.memory_space<vmem>>, %arg4: memref<1x3x8x128xf32, #tpu.memory_space<vmem>>) attributes {dimension_semantics = [#tpu.dimension_semantics<parallel>, #tpu.dimension_semantics<arbitrary>], iteration_bounds = array<i64: 1, 1>, scalar_prefetch = 0 : i64, scratch_operands = 0 : i64, tpu.core_type = #tpu.core_type<tc>, window_params = [{transform_indices = @transform_0, window_bounds = array<i64: 16, 128>}, {transform_indices = @transform_1, window_bounds = array<i64: 16, 128>}, {transform_indices = @transform_2, window_bounds = array<i64: 1, 3, 8, 128>}]} {
    %c0_i32 = arith.constant 0 : i32
    %0 = arith.cmpi eq, %arg1, %c0_i32 : i32
    %1 = arith.extui %0 : i1 to i32
    %c0_i32_0 = arith.constant 0 : i32
    %2 = arith.cmpi ne, %1, %c0_i32_0 : i32
    scf.if %2 {
      %cst_29 = arith.constant 0.000000e+00 : f32
      %35 = vector.broadcast %cst_29 : f32 to vector<1x3x8x128xf32>
      %c0_30 = arith.constant 0 : index
      %c0_31 = arith.constant 0 : index
      %c0_32 = arith.constant 0 : index
      %c0_33 = arith.constant 0 : index
      %36 = vector.load %arg4[%c0_30, %c0_31, %c0_32, %c0_33] : memref<1x3x8x128xf32, #tpu.memory_space<vmem>>, vector<1x3x8x128xf32>
      tpu.vector_store %arg4[%c0_30, %c0_31, %c0_32, %c0_33], %35 {strides = array<i32>} : memref<1x3x8x128xf32, #tpu.memory_space<vmem>>, vector<1x3x8x128xf32>,
    } else {
    }
    %c0 = arith.constant 0 : index
    %c0_1 = arith.constant 0 : index
    %3 = vector.load %arg2[%c0, %c0_1] : memref<16x128xf32, #tpu.memory_space<vmem>>, vector<16x128xf32>
    %c0_2 = arith.constant 0 : index
    %c0_3 = arith.constant 0 : index
    %4 = vector.load %arg3[%c0_2, %c0_3] : memref<16x128xf32, #tpu.memory_space<vmem>>, vector<16x128xf32>
    %cst = arith.constant 9.99999968E-21 : f32
    %5 = vector.broadcast %cst : f32 to vector<16x128xf32>
    %6 = arith.addf %4, %5 : vector<16x128xf32>
    %7 = arith.subf %6, %3 : vector<16x128xf32>
    %8 = math.absf %7 : vector<16x128xf32>
    %9 = tpu.reciprocal %6 : vector<16x128xf32> -> vector<16x128xf32>
    %10 = arith.mulf %8, %9 : vector<16x128xf32>
    %11 = vector.shape_cast %10 : vector<16x128xf32> to vector<2x8x128xf32>
    %12 = vector.shape_cast %3 : vector<16x128xf32> to vector<2x8x128xf32>
    %c0_4 = arith.constant 0 : index
    %c0_5 = arith.constant 0 : index
    %c0_6 = arith.constant 0 : index
    %c0_7 = arith.constant 0 : index
    %13 = vector.load %arg4[%c0_4, %c0_5, %c0_6, %c0_7] : memref<1x3x8x128xf32, #tpu.memory_space<vmem>>, vector<1x1x8x128xf32>
    %14 = vector.shape_cast %13 : vector<1x1x8x128xf32> to vector<8x128xf32>
    %cst_8 = arith.constant dense<0.000000e+00> : vector<8x128xf32>
    %15 = vector.multi_reduction <add>, %11, %cst_8 [0] : vector<2x8x128xf32> to vector<8x128xf32>
    %16 = arith.addf %14, %15 : vector<8x128xf32>
    %c0_9 = arith.constant 0 : index
    %c0_10 = arith.constant 0 : index
    %c0_11 = arith.constant 0 : index
    %c0_12 = arith.constant 0 : index
    %17 = vector.load %arg4[%c0_9, %c0_10, %c0_11, %c0_12] : memref<1x3x8x128xf32, #tpu.memory_space<vmem>>, vector<1x1x8x128xf32>
    %18 = vector.shape_cast %17 : vector<1x1x8x128xf32> to vector<8x128xf32>
    %19 = vector.shape_cast %16 : vector<8x128xf32> to vector<1x1x8x128xf32>
    tpu.vector_store %arg4[%c0_9, %c0_10, %c0_11, %c0_12], %19 {strides = array<i32>} : memref<1x3x8x128xf32, #tpu.memory_space<vmem>>, vector<1x1x8x128xf32>,
    %c0_13 = arith.constant 0 : index
    %c1 = arith.constant 1 : index
    %c0_14 = arith.constant 0 : index
    %c0_15 = arith.constant 0 : index
    %20 = vector.load %arg4[%c0_13, %c1, %c0_14, %c0_15] : memref<1x3x8x128xf32, #tpu.memory_space<vmem>>, vector<1x1x8x128xf32>
    %21 = vector.shape_cast %20 : vector<1x1x8x128xf32> to vector<8x128xf32>
    %cst_16 = arith.constant dense<0.000000e+00> : vector<8x128xf32>
    %22 = vector.multi_reduction <add>, %12, %cst_16 [0] : vector<2x8x128xf32> to vector<8x128xf32>
    %23 = arith.addf %21, %22 : vector<8x128xf32>
    %c0_17 = arith.constant 0 : index
    %c1_18 = arith.constant 1 : index
    %c0_19 = arith.constant 0 : index
    %c0_20 = arith.constant 0 : index
    %24 = vector.load %arg4[%c0_17, %c1_18, %c0_19, %c0_20] : memref<1x3x8x128xf32, #tpu.memory_space<vmem>>, vector<1x1x8x128xf32>
    %25 = vector.shape_cast %24 : vector<1x1x8x128xf32> to vector<8x128xf32>
    %26 = vector.shape_cast %23 : vector<8x128xf32> to vector<1x1x8x128xf32>
    tpu.vector_store %arg4[%c0_17, %c1_18, %c0_19, %c0_20], %26 {strides = array<i32>} : memref<1x3x8x128xf32, #tpu.memory_space<vmem>>, vector<1x1x8x128xf32>,
    %c0_21 = arith.constant 0 : index
    %c2 = arith.constant 2 : index
    %c0_22 = arith.constant 0 : index
    %c0_23 = arith.constant 0 : index
    %27 = vector.load %arg4[%c0_21, %c2, %c0_22, %c0_23] : memref<1x3x8x128xf32, #tpu.memory_space<vmem>>, vector<1x1x8x128xf32>
    %28 = vector.shape_cast %27 : vector<1x1x8x128xf32> to vector<8x128xf32>
    %29 = arith.mulf %12, %12 : vector<2x8x128xf32>
    %cst_24 = arith.constant dense<0.000000e+00> : vector<8x128xf32>
    %30 = vector.multi_reduction <add>, %29, %cst_24 [0] : vector<2x8x128xf32> to vector<8x128xf32>
    %31 = arith.addf %28, %30 : vector<8x128xf32>
    %c0_25 = arith.constant 0 : index
    %c2_26 = arith.constant 2 : index
    %c0_27 = arith.constant 0 : index
    %c0_28 = arith.constant 0 : index
    %32 = vector.load %arg4[%c0_25, %c2_26, %c0_27, %c0_28] : memref<1x3x8x128xf32, #tpu.memory_space<vmem>>, vector<1x1x8x128xf32>
    %33 = vector.shape_cast %32 : vector<1x1x8x128xf32> to vector<8x128xf32>
    %34 = vector.shape_cast %31 : vector<8x128xf32> to vector<1x1x8x128xf32>
    tpu.vector_store %arg4[%c0_25, %c2_26, %c0_27, %c0_28], %34 {strides = array<i32>} : memref<1x3x8x128xf32, #tpu.memory_space<vmem>>, vector<1x1x8x128xf32>,
    return
  }
  func.func @transform_0(%arg0: i32, %arg1: i32) -> (i32, i32) {
    %c1_i32 = arith.constant 1 : i32
    %0 = arith.muli %arg0, %c1_i32 : i32
    %1 = arith.addi %0, %arg1 : i32
    %c0_i32 = arith.constant 0 : i32
    %c0_i32_0 = arith.constant 0 : i32
    return %1, %c0_i32 : i32, i32
  }
  func.func @transform_1(%arg0: i32, %arg1: i32) -> (i32, i32) {
    %c1_i32 = arith.constant 1 : i32
    %0 = arith.muli %arg0, %c1_i32 : i32
    %1 = arith.addi %0, %arg1 : i32
    %c0_i32 = arith.constant 0 : i32
    %c0_i32_0 = arith.constant 0 : i32
    return %1, %c0_i32 : i32, i32
  }
  func.func @transform_2(%arg0: i32, %arg1: i32) -> (i32, i32, i32, i32) {
    %c0_i32 = arith.constant 0 : i32
    %c0_i32_0 = arith.constant 0 : i32
    %c0_i32_1 = arith.constant 0 : i32
    %c0_i32_2 = arith.constant 0 : i32
    return %arg0, %c0_i32, %c0_i32_0, %c0_i32_1 : i32, i32, i32, i32
  }
}

</mosaic_0001>

<llo_original>
// kernel: tpu_custom_call.1
$region0: #{tpu_custom_call.1}
  #allocation0 [shape = 'u32[]', space=smem, size = 0x4, offset = 0x4, fixed_abs, tag = 'smem constant byte address 0x4 - core index']
  #allocation1 [shape = 'u32[144,128]{1,0:T(1,128)}', space=vmem, size = 0x12000, scoped, tag = 'internal scratch']
  %s0 = inlined_call_operand.hbm [shape: f32[16,128], index: 0, kind: input, shape index: {}]
  %s1 = inlined_call_operand.hbm [shape: f32[16,128], index: 1, kind: input, shape index: {}]
  %s2 = inlined_call_operand.hbm [shape: f32[1,3,8,128], index: 2, kind: output, shape index: {}]
  %s3 = sld [smem:[#allocation0]]
  $region30: #{tpu_custom_call.1} parent=0
    _
  %s5 = ssub.s32 1, %s3
  %s6 = scalar_select 0, %s5, %s3
  $region1: #{tpu_custom_call.1} parent=0
    #allocation2 [shape = 'u8[8192]{0}', space=vmem, size = 0x2000, scoped, tag = 'input window, operand 0, single buffered']
    #allocation3 [shape = 's32[1]{0}', space=sflag, size = 0x4, scoped, tag = 'scoped memory for tpu_custom_call.1']
    #allocation4 [shape = 's32[1]{0}', space=sflag, size = 0x4, scoped, tag = 'scoped memory for tpu_custom_call.1']
    #allocation5 [shape = 'u8[8192]{0}', space=vmem, size = 0x2000, scoped, tag = 'input window, operand 1, single buffered']
    #allocation6 [shape = 's32[1]{0}', space=sflag, size = 0x4, scoped, tag = 'scoped memory for tpu_custom_call.1']
    #allocation7 [shape = 'u8[12288]{0}', space=vmem, size = 0x3000, scoped, tag = 'output window, operand 0, single buffered']
    %7 = vsyncpa [#allocation3], 0
    %8 = vsyncpa [#allocation6], 0
    %9 = vsyncpa [#allocation4], 0
    // Predicated region
    $region2: #{tpu_custom_call.1} parent=1 // pred_check
      _
    $region3: #{tpu_custom_call.1} parent=1 // pred_check_branch
      %11 = sbr.rel (0) target = $region5
    $region4: #{tpu_custom_call.1} parent=1 // pred_region
      %s12 = sadd.s32 0, 0
      %s13 = smul.u32 2, %s12
      %s15 = ssub.s32 256, 256
      %16 = vsyncadd [#allocation3], %s15
      %s17 = smul.addr %s13, 128
      %s18 = scalar_lea.hbm %s0, %s17
      %s19 = sshll.u32 [#allocation2], 4
      %s20 = int_to_ptr.vmem [resolvable:$true] %s19
      %25 = dma.hbm_to_vmem [thread:$0]  %s18, 256, %s20, [#allocation3], 128, 128, 8
    $region5: #{tpu_custom_call.1} parent=1 // pred_fallthru
      _
    // Predicated region
    $region6: #{tpu_custom_call.1} parent=1 // pred_check
      _
    $region7: #{tpu_custom_call.1} parent=1 // pred_check_branch
      %27 = sbr.rel (0) target = $region9
    $region8: #{tpu_custom_call.1} parent=1 // pred_region
      %s28 = sadd.s32 0, 0
      %s29 = smul.u32 2, %s28
      %s31 = ssub.s32 256, 256
      %32 = vsyncadd [#allocation6], %s31
      %s33 = smul.addr %s29, 128
      %s34 = scalar_lea.hbm %s1, %s33
      %s35 = sshll.u32 [#allocation5], 4
      %s36 = int_to_ptr.vmem [resolvable:$true] %s35
      %41 = dma.hbm_to_vmem [thread:$0]  %s34, 256, %s36, [#allocation6], 128, 128, 8
    $region9: #{tpu_custom_call.1} parent=1 // pred_fallthru
      _
    // Predicated region
    $region10: #{tpu_custom_call.1} parent=1 // pred_check
      _
    $region11: #{tpu_custom_call.1} parent=1 // pred_check_branch
      %43 = sbr.rel (0) target = $region13
    $region12: #{tpu_custom_call.1} parent=1 // pred_region
      %44 = dma.done [#allocation3], 256
    $region13: #{tpu_custom_call.1} parent=1 // pred_fallthru
      _
    // Predicated region
    $region14: #{tpu_custom_call.1} parent=1 // pred_check
      _
    $region15: #{tpu_custom_call.1} parent=1 // pred_check_branch
      %46 = sbr.rel (0) target = $region17
    $region16: #{tpu_custom_call.1} parent=1 // pred_region
      %47 = dma.done [#allocation6], 256
    $region17: #{tpu_custom_call.1} parent=1 // pred_fallthru
      _
    %s48 = sadd.s32 0, 0
    %s49 = smul.u32 2, %s48
    %s50 = sadd.s32 0, 0
    %s51 = smul.u32 2, %s50
    %p52 = scmp.eq.s32.totalorder 0, 0
    // Predicated region
    $region18: #{tpu_custom_call.1} parent=1 // pred_check
      %p53 = pneg %p52
    $region19: #{tpu_custom_call.1} parent=1 // pred_check_branch
      %55 = sbr.rel (%p53) target = $region21
    $region20: #{tpu_custom_call.1} parent=1 // pred_region
      %56 = vst [vmem:[#allocation7] sm:$0xff] 0.0
      %57 = vst [vmem:[#allocation7 + $0x8] sm:$0xff] 0.0
      %58 = vst [vmem:[#allocation7 + $0x10] sm:$0xff] 0.0
    $region21: #{tpu_custom_call.1} parent=1 // pred_fallthru
      _
    %v59 = vld [vmem:[#allocation2] sm:$0xff]
    %v60 = vld [vmem:[#allocation2 + $0x8] sm:$0xff]
    %v61 = vld [vmem:[#allocation5] sm:$0xff]
    %v62 = vld [vmem:[#allocation5 + $0x8] sm:$0xff]
    %v63 = vadd.f32 %v61, 1e-20
    %v64 = vadd.f32 %v62, 1e-20
    %v65 = vsub.f32 %v63, %v59
    %v66 = vsub.f32 %v64, %v60
    %v67 = vand.u32 2147483647, %v65
    %v68 = vand.u32 2147483647, %v66
    %v69 = vrcp.pop %v63
    %v70 = vrcp.pop %v64
    %v71 = vmul.f32 %v67, %v69
    %v72 = vmul.f32 %v68, %v70
    %v73 = vld [vmem:[#allocation7] sm:$0xff]
    %v74 = vadd.f32 %v71, %v72
    %v75 = vadd.f32 %v73, %v74
    %76 = vst [vmem:[#allocation7] sm:$0xff] %v75
    %s77 = scalar_lea.vmem [#allocation7], 8
    %v78 = vld [vmem:[%s77] sm:$0xff]
    %v79 = vadd.f32 %v59, %v60
    %v80 = vadd.f32 %v78, %v79
    %81 = vst [vmem:[%s77] sm:$0xff] %v80
    %s82 = scalar_lea.vmem [#allocation7], 16
    %v83 = vld [vmem:[%s82] sm:$0xff]
    %v84 = vmul.f32 %v59, %v59
    %v85 = vmul.f32 %v60, %v60
    %v86 = vadd.f32 %v84, %v85
    %v87 = vadd.f32 %v83, %v86
    %88 = vst [vmem:[%s82] sm:$0xff] %v87
    // Predicated region
    $region22: #{tpu_custom_call.1} parent=1 // pred_check
      _
    $region23: #{tpu_custom_call.1} parent=1 // pred_check_branch
      %90 = sbr.rel (0) target = $region25
    $region24: #{tpu_custom_call.1} parent=1 // pred_region
      %s92 = ssub.s32 384, 384
      %93 = vsyncadd [#allocation4], %s92
      %s94 = sshll.u32 [#allocation7], 4
      %s95 = int_to_ptr.vmem [resolvable:$true] %s94
      %100 = dma.vmem_to_hbm [thread:$0]  %s95, 384, %s2, [#allocation4], 128, 128, 8
    $region25: #{tpu_custom_call.1} parent=1 // pred_fallthru
      _
    // Predicated region
    $region26: #{tpu_custom_call.1} parent=1 // pred_check
      _
    $region27: #{tpu_custom_call.1} parent=1 // pred_check_branch
      %102 = sbr.rel (0) target = $region29
    $region28: #{tpu_custom_call.1} parent=1 // pred_region
      %103 = dma.done [#allocation4], 384
    $region29: #{tpu_custom_call.1} parent=1 // pred_fallthru
      _
    %104 = vsyncpa [#allocation3], 1
    %105 = vsyncpa [#allocation6], 1
    %106 = vsyncpa [#allocation4], 1

</llo_original>
